<compile_context>
chip_gen: v5e
topology: v5e:2x2
jax: 0.10.0
libtpu: 0.0.40
codegen_flags: <defaults>
</compile_context>

<pallas_src>
import functools
import math

import jax
import jax.numpy as jnp
from jax import lax
from jax.experimental import pallas as pl
from jax.experimental.pallas import tpu as pltpu


def _flash_sdpa_kernel(q_ref, k_ref, v_ref, mask_ref, o_ref,
                       qs_ref, m_ref, l_ref, acc_ref,
                       *, compute_dtype, exact_softmax):
    # q_ref: (TQ, E)   k_ref / v_ref: (TKV, E)   mask_ref: (TQ, TKV)
    # o_ref: (TQ, E)
    # qs_ref: (TQ, E) compute_dtype   m_ref / l_ref: (TQ, 1) f32
    # acc_ref: (TQ, E) f32
    kv = pl.program_id(2)

    @pl.when(kv == 0)
    def _init():
        # Fold 1/sqrt(E) into q once per (b, q-tile); the q block is resident
        # across the whole kv loop (its index_map ignores kv).
        scale = 1.0 / math.sqrt(q_ref.shape[-1])
        qs_ref[...] = (q_ref[...].astype(jnp.float32) * scale).astype(
            compute_dtype)
        m_ref[...] = jnp.full(m_ref.shape, -jnp.inf, dtype=m_ref.dtype)
        l_ref[...] = jnp.zeros(l_ref.shape, dtype=l_ref.dtype)
        acc_ref[...] = jnp.zeros(acc_ref.shape, dtype=acc_ref.dtype)

    # scores = q_scaled @ k^T, contracting on E directly (no XLU transpose).
    s = lax.dot_general(
        qs_ref[...], k_ref[...].astype(compute_dtype),
        dimension_numbers=(((1,), (1,)), ((), ())),
        preferred_element_type=jnp.float32,
    )                                                   # (TQ, TKV) f32
    s = s + mask_ref[...].astype(jnp.float32)

    # Online (streaming) softmax update, all in f32.
    # NOTE: rows fully masked to -inf produce NaN, same as the reference.
    m_prev = m_ref[...]
    m_new = jnp.maximum(m_prev, jnp.max(s, axis=-1, keepdims=True))
    alpha = jnp.exp(m_prev - m_new)
    p = jnp.exp(s - m_new)
    l_ref[...] = alpha * l_ref[...] + jnp.sum(p, axis=-1, keepdims=True)
    acc_ref[...] = alpha * acc_ref[...] + lax.dot_general(
        p.astype(compute_dtype), v_ref[...].astype(compute_dtype),
        dimension_numbers=(((1,), (0,)), ((), ())),
        preferred_element_type=jnp.float32,
    )
    m_ref[...] = m_new

    # TODO(synk): dropout(p=0.1) is identity in eval mode; a train-mode port
    # would draw a keep-mask on p here via pltpu.prng_seed + prng_random_bits.

    @pl.when(kv == pl.num_programs(2) - 1)
    def _finalize():
        l = l_ref[...]
        inv = (1.0 / l) if exact_softmax else pl.reciprocal(l, approx=True)
        o_ref[...] = (acc_ref[...] * inv).astype(o_ref.dtype)


def _pick_tile(S, candidates):
    """Largest candidate that divides S; otherwise the whole sequence."""
    for t in candidates:
        if S % t == 0:
            return t
    return S


def scaled_dot_product_attention(qkv, attention_mask, *,
                                 compute_dtype=jnp.bfloat16,
                                 tq=None, tkv=None):
    """qkv: [B, S, 3E], attention_mask: [B, S, S] (additive) -> [B, S, E]."""
    B, S, three_e = qkv.shape
    E = three_e // 3
    assert three_e == 3 * E, "last dim of qkv must be 3 * embed_dim"
    assert attention_mask.shape == (B, S, S)

    compute_dtype = jnp.dtype(compute_dtype)
    exact_softmax = compute_dtype == jnp.dtype(jnp.float32)

    # Query tile <= 256 (MXU-friendly, VMEM-bounded); KV tile <= 512 and a
    # multiple of 128 so mask / score tiles stay lane-dense; otherwise fall
    # back to the full sequence (small-S path).
    if tq is None:
        tq = _pick_tile(S, (256, 128, 64, 32, 16, 8))
    if tkv is None:
        tkv = _pick_tile(S, (512, 384, 256, 128))
    assert S % tq == 0 and S % tkv == 0
    n_q, n_kv = S // tq, S // tkv

    # bf16 production path: stream qkv and the additive mask in bf16 (halves
    # the dominant (B,S,S) mask HBM stream and the q/k/v stream; in-kernel
    # k/v casts become no-ops).  The f32 check path streams f32.
    if exact_softmax:
        qkv_s, mask_s = qkv, attention_mask
    else:
        qkv_s = qkv.astype(compute_dtype)
        mask_s = attention_mask.astype(compute_dtype)

    if E % 128 == 0:
        # Fast path: q/k/v split purely via lane-aligned BlockSpec windows on
        # the fused (B, S, 3E) array (block index 0/1/2 on the last axis).
        q_in = k_in = v_in = qkv_s
        q_spec = pl.BlockSpec((pl.Squeezed(), tq, E),
                              lambda b, qi, ki: (b, qi, 0))
        k_spec = pl.BlockSpec((pl.Squeezed(), tkv, E),
                              lambda b, qi, ki: (b, ki, 1))
        v_spec = pl.BlockSpec((pl.Squeezed(), tkv, E),
                              lambda b, qi, ki: (b, ki, 2))
    else:
        # Lane-unaligned E: split once at the XLA level so every operand's
        # last block dim equals its full array dim (legal block shape).
        q_in = qkv_s[:, :, :E]
        k_in = qkv_s[:, :, E:2 * E]
        v_in = qkv_s[:, :, 2 * E:]
        q_spec = pl.BlockSpec((pl.Squeezed(), tq, E),
                              lambda b, qi, ki: (b, qi, 0))
        k_spec = pl.BlockSpec((pl.Squeezed(), tkv, E),
                              lambda b, qi, ki: (b, ki, 0))
        v_spec = pl.BlockSpec((pl.Squeezed(), tkv, E),
                              lambda b, qi, ki: (b, ki, 0))

    mask_spec = pl.BlockSpec((pl.Squeezed(), tq, tkv),
                             lambda b, qi, ki: (b, qi, ki))
    out_spec = pl.BlockSpec((pl.Squeezed(), tq, E),
                            lambda b, qi, ki: (b, qi, 0))

    # Accurate VMEM accounting (actual stream dtypes, double-buffered tiles,
    # scratch, f32 temporaries) clamped generation-aware.
    stream_i = jnp.dtype(qkv_s.dtype).itemsize
    mask_i = jnp.dtype(mask_s.dtype).itemsize
    out_i = jnp.dtype(qkv.dtype).itemsize
    est = (2 * tq * E * stream_i          # q (double-buffered)
           + 4 * tkv * E * stream_i       # k + v (double-buffered)
           + 2 * tq * tkv * mask_i        # mask (double-buffered)
           + 2 * tq * E * out_i           # out (double-buffered)
           + tq * E * compute_dtype.itemsize   # scaled-q scratch
           + 2 * tq * 128 * 4             # m, l (lane-padded f32)
           + tq * E * 4                   # f32 output accumulator
           + 3 * tq * tkv * 4             # s / p / p-cast temporaries
           + (4 << 20))                   # compiler-internal headroom
    try:
        phys = pltpu.get_tpu_info().vmem_capacity_bytes
    except Exception:                     # non-TPU backend / interpret mode
        phys = 64 << 20                   # assume the smallest (v7x)
    vmem_limit = int(min(max(est, 32 << 20), int(0.8 * phys)))

    kernel = functools.partial(_flash_sdpa_kernel,
                               compute_dtype=compute_dtype,
                               exact_softmax=exact_softmax)
    return pl.pallas_call(
        kernel,
        out_shape=jax.ShapeDtypeStruct((B, S, E), qkv.dtype),
        grid_spec=pltpu.PrefetchScalarGridSpec(
            num_scalar_prefetch=0,
            grid=(B, n_q, n_kv),
            in_specs=[q_spec, k_spec, v_spec, mask_spec],
            out_specs=out_spec,
            scratch_shapes=[
                pltpu.VMEM((tq, E), compute_dtype),   # scaled q (resident)
                pltpu.VMEM((tq, 1), jnp.float32),     # running max m
                pltpu.VMEM((tq, 1), jnp.float32),     # running denom l
                pltpu.VMEM((tq, E), jnp.float32),     # output accumulator
            ]),
        compiler_params=pltpu.CompilerParams(
            dimension_semantics=("parallel", "parallel", "arbitrary"),
            vmem_limit_bytes=vmem_limit,
        ),
    )(q_in, k_in, v_in, mask_s)


def _reference(qkv, attention_mask):
    E = qkv.shape[-1] // 3
    q = qkv[:, :, :E] / math.sqrt(E)
    k = qkv[:, :, E:2 * E]
    v = qkv[:, :, 2 * E:]
    s = jnp.einsum("bqe,bke->bqk", q, k) + attention_mask
    p = jax.nn.softmax(s, axis=-1)
    return jnp.einsum("bqk,bke->bqe", p, v)


if __name__ == "__main__":
    B, S, E = 2, 8, 128  # E multiple of 128 -> lane-dense q/k/v/output tiles
    key = jax.random.PRNGKey(0)
    k1, k2 = jax.random.split(key)
    qkv = jax.random.normal(k1, (B, S, 3 * E), dtype=jnp.float32)
    # additive attention mask (0 / -1e9 style); small random values here
    attention_mask = 0.1 * jax.random.normal(k2, (B, S, S), dtype=jnp.float32)

    ref = _reference(qkv, attention_mask)

    # f32 verification path: exact softmax normalization, f32 streams.
    out_f32 = scaled_dot_product_attention(qkv, attention_mask,
                                           compute_dtype=jnp.float32)
    out_f32 = jax.block_until_ready(out_f32)
    assert out_f32.shape == (B, S, E)
    assert jnp.allclose(out_f32, ref, atol=2e-3, rtol=2e-3), "f32 path mismatch"

    # Default production path: bf16 streaming / bf16 MXU / f32 accumulation.
    out_bf16 = scaled_dot_product_attention(qkv, attention_mask)
    out_bf16 = jax.block_until_ready(out_bf16)
    assert out_bf16.shape == (B, S, E)
    assert jnp.allclose(out_bf16, ref, atol=5e-2, rtol=5e-2), "bf16 path mismatch"

    print("KERNEL_OK")
</pallas_src>

<mosaic_0001>
module attributes {stable_mosaic.version = 11 : i64} {
  func.func @_flash_sdpa_kernel(%arg0: i32, %arg1: i32, %arg2: i32, %arg3: memref<1x8x128xf32, #tpu.memory_space<vmem>>, %arg4: memref<1x8x128xf32, #tpu.memory_space<vmem>>, %arg5: memref<1x8x128xf32, #tpu.memory_space<vmem>>, %arg6: memref<1x8x8xf32, #tpu.memory_space<vmem>>, %arg7: memref<1x8x128xf32, #tpu.memory_space<vmem>>, %arg8: memref<8x128xf32, #tpu.memory_space<vmem>>, %arg9: memref<8x1xf32, #tpu.memory_space<vmem>>, %arg10: memref<8x1xf32, #tpu.memory_space<vmem>>, %arg11: memref<8x128xf32, #tpu.memory_space<vmem>>) attributes {dimension_semantics = [#tpu.dimension_semantics<parallel>, #tpu.dimension_semantics<parallel>, #tpu.dimension_semantics<arbitrary>], iteration_bounds = array<i64: 2, 1, 1>, scalar_prefetch = 0 : i64, scratch_operands = 4 : i64, tpu.core_type = #tpu.core_type<tc>, window_params = [{transform_indices = @transform_0, window_bounds = array<i64: 1, 8, 128>}, {transform_indices = @transform_1, window_bounds = array<i64: 1, 8, 128>}, {transform_indices = @transform_2, window_bounds = array<i64: 1, 8, 128>}, {transform_indices = @transform_3, window_bounds = array<i64: 1, 8, 8>}, {transform_indices = @transform_4, window_bounds = array<i64: 1, 8, 128>}]} {
    %c0_i32 = arith.constant 0 : i32
    %0 = arith.cmpi eq, %arg2, %c0_i32 : i32
    %1 = arith.extui %0 : i1 to i32
    %c0_i32_0 = arith.constant 0 : i32
    %2 = arith.cmpi ne, %1, %c0_i32_0 : i32
    scf.if %2 {
      %c0_28 = arith.constant 0 : index
      %c0_29 = arith.constant 0 : index
      %c0_30 = arith.constant 0 : index
      %37 = vector.load %arg3[%c0_28, %c0_29, %c0_30] : memref<1x8x128xf32, #tpu.memory_space<vmem>>, vector<1x8x128xf32>
      %38 = vector.shape_cast %37 : vector<1x8x128xf32> to vector<8x128xf32>
      %cst_31 = arith.constant 0.0883883461 : f32
      %39 = vector.broadcast %cst_31 : f32 to vector<8x128xf32>
      %40 = arith.mulf %38, %39 : vector<8x128xf32>
      %c0_32 = arith.constant 0 : index
      %c0_33 = arith.constant 0 : index
      %41 = vector.load %arg8[%c0_32, %c0_33] : memref<8x128xf32, #tpu.memory_space<vmem>>, vector<8x128xf32>
      tpu.vector_store %arg8[%c0_32, %c0_33], %40 {strides = array<i32>} : memref<8x128xf32, #tpu.memory_space<vmem>>, vector<8x128xf32>,
      %cst_34 = arith.constant 0xFF800000 : f32
      %42 = vector.broadcast %cst_34 : f32 to vector<8x1xf32>
      %c0_35 = arith.constant 0 : index
      %c0_36 = arith.constant 0 : index
      %43 = vector.load %arg9[%c0_35, %c0_36] : memref<8x1xf32, #tpu.memory_space<vmem>>, vector<8x1xf32>
      tpu.vector_store %arg9[%c0_35, %c0_36], %42 {strides = array<i32>} : memref<8x1xf32, #tpu.memory_space<vmem>>, vector<8x1xf32>,
      %cst_37 = arith.constant 0.000000e+00 : f32
      %44 = vector.broadcast %cst_37 : f32 to vector<8x1xf32>
      %c0_38 = arith.constant 0 : index
      %c0_39 = arith.constant 0 : index
      %45 = vector.load %arg10[%c0_38, %c0_39] : memref<8x1xf32, #tpu.memory_space<vmem>>, vector<8x1xf32>
      tpu.vector_store %arg10[%c0_38, %c0_39], %44 {strides = array<i32>} : memref<8x1xf32, #tpu.memory_space<vmem>>, vector<8x1xf32>,
      %cst_40 = arith.constant 0.000000e+00 : f32
      %46 = vector.broadcast %cst_40 : f32 to vector<8x128xf32>
      %c0_41 = arith.constant 0 : index
      %c0_42 = arith.constant 0 : index
      %47 = vector.load %arg11[%c0_41, %c0_42] : memref<8x128xf32, #tpu.memory_space<vmem>>, vector<8x128xf32>
      tpu.vector_store %arg11[%c0_41, %c0_42], %46 {strides = array<i32>} : memref<8x128xf32, #tpu.memory_space<vmem>>, vector<8x128xf32>,
    } else {
    }
    %c0 = arith.constant 0 : index
    %c0_1 = arith.constant 0 : index
    %3 = vector.load %arg8[%c0, %c0_1] : memref<8x128xf32, #tpu.memory_space<vmem>>, vector<8x128xf32>
    %c0_2 = arith.constant 0 : index
    %c0_3 = arith.constant 0 : index
    %c0_4 = arith.constant 0 : index
    %4 = vector.load %arg4[%c0_2, %c0_3, %c0_4] : memref<1x8x128xf32, #tpu.memory_space<vmem>>, vector<1x8x128xf32>
    %5 = vector.shape_cast %4 : vector<1x8x128xf32> to vector<8x128xf32>
    %cst = arith.constant dense<0.000000e+00> : vector<8x8xf32>
    %6 = tpu.matmul %3, %5, %cst {dimension_numbers = #tpu.dot_dimension_numbers<[1], [1], [0], [0], [0, 0, 1, 0], [], []>} : vector<8x128xf32>, vector<8x128xf32>, vector<8x8xf32> -> vector<8x8xf32>
    %c0_5 = arith.constant 0 : index
    %c0_6 = arith.constant 0 : index
    %c0_7 = arith.constant 0 : index
    %7 = vector.load %arg6[%c0_5, %c0_6, %c0_7] : memref<1x8x8xf32, #tpu.memory_space<vmem>>, vector<1x8x8xf32>
    %8 = vector.shape_cast %7 : vector<1x8x8xf32> to vector<8x8xf32>
    %9 = arith.addf %6, %8 : vector<8x8xf32>
    %c0_8 = arith.constant 0 : index
    %c0_9 = arith.constant 0 : index
    %10 = vector.load %arg9[%c0_8, %c0_9] : memref<8x1xf32, #tpu.memory_space<vmem>>, vector<8x1xf32>
    %cst_10 = arith.constant dense<0xFF800000> : vector<8xf32>
    %11 = vector.multi_reduction <maximumf>, %9, %cst_10 [1] : vector<8x8xf32> to vector<8xf32>
    %12 = vector.shape_cast %11 : vector<8xf32> to vector<8x1xf32>
    %13 = arith.maximumf %10, %12 : vector<8x1xf32>
    %14 = arith.subf %10, %13 : vector<8x1xf32>
    %15 = math.exp %14 : vector<8x1xf32>
    %16 = vector.broadcast %13 : vector<8x1xf32> to vector<8x8xf32>
    %17 = arith.subf %9, %16 : vector<8x8xf32>
    %18 = math.exp %17 : vector<8x8xf32>
    %c0_11 = arith.constant 0 : index
    %c0_12 = arith.constant 0 : index
    %19 = vector.load %arg10[%c0_11, %c0_12] : memref<8x1xf32, #tpu.memory_space<vmem>>, vector<8x1xf32>
    %20 = arith.mulf %15, %19 : vector<8x1xf32>
    %cst_13 = arith.constant dense<0.000000e+00> : vector<8xf32>
    %21 = vector.multi_reduction <add>, %18, %cst_13 [1] : vector<8x8xf32> to vector<8xf32>
    %22 = vector.shape_cast %21 : vector<8xf32> to vector<8x1xf32>
    %23 = arith.addf %20, %22 : vector<8x1xf32>
    %c0_14 = arith.constant 0 : index
    %c0_15 = arith.constant 0 : index
    %24 = vector.load %arg10[%c0_14, %c0_15] : memref<8x1xf32, #tpu.memory_space<vmem>>, vector<8x1xf32>
    tpu.vector_store %arg10[%c0_14, %c0_15], %23 {strides = array<i32>} : memref<8x1xf32, #tpu.memory_space<vmem>>, vector<8x1xf32>,
    %c0_16 = arith.constant 0 : index
    %c0_17 = arith.constant 0 : index
    %25 = vector.load %arg11[%c0_16, %c0_17] : memref<8x128xf32, #tpu.memory_space<vmem>>, vector<8x128xf32>
    %26 = vector.broadcast %15 : vector<8x1xf32> to vector<8x128xf32>
    %27 = arith.mulf %26, %25 : vector<8x128xf32>
    %c0_18 = arith.constant 0 : index
    %c0_19 = arith.constant 0 : index
    %c0_20 = arith.constant 0 : index
    %28 = vector.load %arg5[%c0_18, %c0_19, %c0_20] : memref<1x8x128xf32, #tpu.memory_space<vmem>>, vector<1x8x128xf32>
    %29 = vector.shape_cast %28 : vector<1x8x128xf32> to vector<8x128xf32>
    %cst_21 = arith.constant dense<0.000000e+00> : vector<8x128xf32>
    %30 = tpu.matmul %18, %29, %cst_21 {dimension_numbers = #tpu.dot_dimension_numbers<[1], [0], [0], [1], [0, 0, 1, 1], [], []>} : vector<8x8xf32>, vector<8x128xf32>, vector<8x128xf32> -> vector<8x128xf32>
    %31 = arith.addf %27, %30 : vector<8x128xf32>
    %c0_22 = arith.constant 0 : index
    %c0_23 = arith.constant 0 : index
    %32 = vector.load %arg11[%c0_22, %c0_23] : memref<8x128xf32, #tpu.memory_space<vmem>>, vector<8x128xf32>
    tpu.vector_store %arg11[%c0_22, %c0_23], %31 {strides = array<i32>} : memref<8x128xf32, #tpu.memory_space<vmem>>, vector<8x128xf32>,
    %c0_24 = arith.constant 0 : index
    %c0_25 = arith.constant 0 : index
    %33 = vector.load %arg9[%c0_24, %c0_25] : memref<8x1xf32, #tpu.memory_space<vmem>>, vector<8x1xf32>
    tpu.vector_store %arg9[%c0_24, %c0_25], %13 {strides = array<i32>} : memref<8x1xf32, #tpu.memory_space<vmem>>, vector<8x1xf32>,
    %c0_i32_26 = arith.constant 0 : i32
    %34 = arith.cmpi eq, %arg2, %c0_i32_26 : i32
    %35 = arith.extui %34 : i1 to i32
    %c0_i32_27 = arith.constant 0 : i32
    %36 = arith.cmpi ne, %35, %c0_i32_27 : i32
    scf.if %36 {
      %c0_28 = arith.constant 0 : index
      %c0_29 = arith.constant 0 : index
      %37 = vector.load %arg10[%c0_28, %c0_29] : memref<8x1xf32, #tpu.memory_space<vmem>>, vector<8x1xf32>
      %cst_30 = arith.constant 1.000000e+00 : f32
      %38 = vector.broadcast %cst_30 : f32 to vector<8x1xf32>
      %39 = arith.divf %38, %37 : vector<8x1xf32>
      %c0_31 = arith.constant 0 : index
      %c0_32 = arith.constant 0 : index
      %40 = vector.load %arg11[%c0_31, %c0_32] : memref<8x128xf32, #tpu.memory_space<vmem>>, vector<8x128xf32>
      %41 = vector.broadcast %39 : vector<8x1xf32> to vector<8x128xf32>
      %42 = arith.mulf %40, %41 : vector<8x128xf32>
      %c0_33 = arith.constant 0 : index
      %c0_34 = arith.constant 0 : index
      %c0_35 = arith.constant 0 : index
      %43 = vector.load %arg7[%c0_33, %c0_34, %c0_35] : memref<1x8x128xf32, #tpu.memory_space<vmem>>, vector<1x8x128xf32>
      %44 = vector.shape_cast %43 : vector<1x8x128xf32> to vector<8x128xf32>
      %45 = vector.shape_cast %42 : vector<8x128xf32> to vector<1x8x128xf32>
      tpu.vector_store %arg7[%c0_33, %c0_34, %c0_35], %45 {strides = array<i32>} : memref<1x8x128xf32, #tpu.memory_space<vmem>>, vector<1x8x128xf32>,
    } else {
    }
    return
  }
  func.func @transform_0(%arg0: i32, %arg1: i32, %arg2: i32) -> (i32, i32, i32) {
    %c0_i32 = arith.constant 0 : i32
    %c0_i32_0 = arith.constant 0 : i32
    return %arg0, %arg1, %c0_i32 : i32, i32, i32
  }
  func.func @transform_1(%arg0: i32, %arg1: i32, %arg2: i32) -> (i32, i32, i32) {
    %c1_i32 = arith.constant 1 : i32
    %c0_i32 = arith.constant 0 : i32
    return %arg0, %arg2, %c1_i32 : i32, i32, i32
  }
  func.func @transform_2(%arg0: i32, %arg1: i32, %arg2: i32) -> (i32, i32, i32) {
    %c2_i32 = arith.constant 2 : i32
    %c0_i32 = arith.constant 0 : i32
    return %arg0, %arg2, %c2_i32 : i32, i32, i32
  }
  func.func @transform_3(%arg0: i32, %arg1: i32, %arg2: i32) -> (i32, i32, i32) {
    %c0_i32 = arith.constant 0 : i32
    return %arg0, %arg1, %arg2 : i32, i32, i32
  }
  func.func @transform_4(%arg0: i32, %arg1: i32, %arg2: i32) -> (i32, i32, i32) {
    %c0_i32 = arith.constant 0 : i32
    %c0_i32_0 = arith.constant 0 : i32
    return %arg0, %arg1, %c0_i32 : i32, i32, i32
  }
}

</mosaic_0001>

<llo_original>
// kernel: tpu_custom_call.1
$region0: #{tpu_custom_call.1}
  #allocation0 [shape = 'u32[]', space=smem, size = 0x4, offset = 0x4, fixed_abs, tag = 'smem constant byte address 0x4 - core index']
  #allocation1 [shape = 'u32[72,128]{1,0:T(1,128)}', space=vmem, size = 0x9000, scoped, tag = 'internal scratch']
  #allocation2 [shape = 'f32[8,128]{1,0:T(8,128)}', space=vmem, size = 0x1000, scoped, tag = 'scratch operand']
  #allocation3 [shape = 'f32[8,1]{1,0:T(8,128)}', space=vmem, size = 0x1000, scoped, tag = 'scratch operand']
  #allocation4 [shape = 'f32[8,1]{1,0:T(8,128)}', space=vmem, size = 0x1000, scoped, tag = 'scratch operand']
  #allocation5 [shape = 'f32[8,128]{1,0:T(8,128)}', space=vmem, size = 0x1000, scoped, tag = 'scratch operand']
  %s0 = inlined_call_operand.hbm [shape: f32[2,8,384], index: 0, kind: input, shape index: {}]
  %s1 = inlined_call_operand.hbm [shape: f32[2,8,384], index: 1, kind: input, shape index: {}]
  %s2 = inlined_call_operand.hbm [shape: f32[2,8,384], index: 2, kind: input, shape index: {}]
  %s3 = inlined_call_operand.hbm [shape: f32[2,8,8], index: 3, kind: input, shape index: {}]
  %s4 = inlined_call_operand.hbm [shape: f32[2,8,128], index: 4, kind: output, shape index: {}]
  %s5 = sld [smem:[#allocation0]]
  $region73: #{tpu_custom_call.1} parent=0
    _
  %s7 = ssub.s32 1, %s5
  %s8 = scalar_select 0, %s7, %s5
  $region1: #{tpu_custom_call.1} parent=0
    #allocation6 [shape = 'u8[8192]{0}', space=vmem, size = 0x2000, scoped, tag = 'input window, operand 0']
    #allocation7 [shape = 's32[2]{0}', space=sflag, size = 0x8, scoped, tag = 'scoped memory for tpu_custom_call.1']
    #allocation8 [shape = 's32[2]{0}', space=sflag, size = 0x8, scoped, tag = 'scoped memory for tpu_custom_call.1']
    #allocation9 [shape = 'u8[8192]{0}', space=vmem, size = 0x2000, scoped, tag = 'input window, operand 1']
    #allocation10 [shape = 's32[2]{0}', space=sflag, size = 0x8, scoped, tag = 'scoped memory for tpu_custom_call.1']
    #allocation11 [shape = 'u8[8192]{0}', space=vmem, size = 0x2000, scoped, tag = 'input window, operand 2']
    #allocation12 [shape = 'u8[8192]{0}', space=vmem, size = 0x2000, scoped, tag = 'input window, operand 3']
    #allocation13 [shape = 's32[2]{0}', space=sflag, size = 0x8, scoped, tag = 'scoped memory for tpu_custom_call.1']
    #allocation14 [shape = 'u8[8192]{0}', space=vmem, size = 0x2000, scoped, tag = 'output window, operand 0']
    %9 = vsyncpa [#allocation7], 0
    %s10 = scalar_lea.sflag [#allocation7], 1
    %11 = vsyncpa %s10, 0
    %12 = vsyncpa [#allocation10], 0
    %s13 = scalar_lea.sflag [#allocation10], 1
    %14 = vsyncpa %s13, 0
    %15 = vsyncpa [#allocation13], 0
    %s16 = scalar_lea.sflag [#allocation13], 1
    %17 = vsyncpa %s16, 0
    %18 = vsyncpa [#allocation8], 0
    %s19 = scalar_lea.sflag [#allocation8], 1
    %20 = vsyncpa %s19, 0
    loop: start=0, step=1, limit=4
    $region2: #{tpu_custom_call.1} parent=1 // loop_pre_header
      _
    $region3: #{tpu_custom_call.1} parent=1 // loop_header
      %s22 = sphi 0, %s26
      %p23 = scmp.ge.s32.totalorder %s22, 4
      %s29 = sphi 0, %s48
      %s30 = sphi 0, %s44
      %s31 = sphi 0, %s40
      %s32 = sphi 0, %s29
      %s33 = sphi 0, %s30
      %s34 = sphi 0, %s31
      %s35 = sphi 0, %s32
      %s36 = sphi 0, %s33
      %s37 = sphi 0, %s34
      %s53 = sphi 0, %s55
      %s56 = sphi 0, %s53
      %s57 = sphi 0, %s56
      %s73 = sphi 0, %s57
      %s81 = sphi 0, %s83
      %s84 = sphi 0, %s81
      %s85 = sphi 0, %s84
      %s101 = sphi 0, %s85
      %s109 = sphi 0, %s111
      %s112 = sphi 0, %s109
      %s113 = sphi 0, %s112
      %s129 = sphi 0, %s113
      %s139 = sphi 0, %s141
      %s142 = sphi 0, %s139
      %s143 = sphi 0, %s142
      %s159 = sphi 0, %s143
      %s167 = sphi 0, %s169
      %s170 = sphi 0, %s167
      %s171 = sphi 0, %s170
      %s187 = sphi 0, %s171
    $region4: #{tpu_custom_call.1} parent=1 // loop_header_branch
      %25 = sbr.rel (%p23) target = $region8
    $region5: #{tpu_custom_call.1} parent=1 // loop_body
      %s27 = ssub.s32 %s22, 1
      %s28 = ssub.s32 %s22, 2
      %s38 = sadd.s32 1, %s31
      %p39 = scmp.ge.s32.totalorder %s38, 1
      %s40 = scalar_select %p39, 0, %s38
      %s41 = sadd.s32 1, %s30
      %s42 = scalar_select %p39, %s41, %s30
      %p43 = scmp.ge.s32.totalorder %s42, 1
      %s44 = scalar_select %p43, 0, %s42
      %s45 = sadd.s32 1, %s29
      %s46 = scalar_select %p43, %s45, %s29
      %p47 = scmp.ge.s32.totalorder %s46, 2
      %s48 = scalar_select %p47, 0, %s46
      %s49 = ssub.s32 %s29, %s48
      %s50 = ssub.s32 %s30, %s44
      %s51 = sor.u32 %s49, %s50
      %p52 = scmp.eq.s32.totalorder %s51, 0
      %s54 = sadd.s32 %s53, 1
      %s55 = scalar_select %p52, %s53, %s54
      %p58 = pneg %p52
      %p59 = scmp.eq.s32.totalorder %s22, 1
      %p60 = por %p58, %p59
      %p61 = scmp.ne.s32.totalorder %s53, %s56
      %p62 = scmp.eq.s32.totalorder %s22, 0
      %p63 = por %p61, %p62
      %p64 = scmp.ne.s32.totalorder %s53, %s56
      %p65 = scmp.eq.s32.totalorder %s27, 1
      %p66 = por %p64, %p65
      %p67 = scmp.ne.s32.totalorder %s56, %s57
      %p68 = scmp.eq.s32.totalorder %s27, 0
      %p69 = por %p67, %p68
      %p70 = scmp.ne.s32.totalorder %s56, %s57
      %p71 = scmp.eq.s32.totalorder %s28, 1
      %p72 = por %p70, %p71
      %p74 = scmp.ne.s32.totalorder %s57, %s73
      %p75 = scmp.eq.s32.totalorder %s28, 0
      %p76 = por %p74, %p75
      %s77 = ssub.s32 %s29, %s48
      %s78 = ssub.s32 %s31, %s40
      %s79 = sor.u32 %s77, %s78
      %p80 = scmp.eq.s32.totalorder %s79, 0
      %s82 = sadd.s32 %s81, 1
      %s83 = scalar_select %p80, %s81, %s82
      %p86 = pneg %p80
      %p87 = scmp.eq.s32.totalorder %s22, 1
      %p88 = por %p86, %p87
      %p89 = scmp.ne.s32.totalorder %s81, %s84
      %p90 = scmp.eq.s32.totalorder %s22, 0
      %p91 = por %p89, %p90
      %p92 = scmp.ne.s32.totalorder %s81, %s84
      %p93 = scmp.eq.s32.totalorder %s27, 1
      %p94 = por %p92, %p93
      %p95 = scmp.ne.s32.totalorder %s84, %s85
      %p96 = scmp.eq.s32.totalorder %s27, 0
      %p97 = por %p95, %p96
      %p98 = scmp.ne.s32.totalorder %s84, %s85
      %p99 = scmp.eq.s32.totalorder %s28, 1
      %p100 = por %p98, %p99
      %p102 = scmp.ne.s32.totalorder %s85, %s101
      %p103 = scmp.eq.s32.totalorder %s28, 0
      %p104 = por %p102, %p103
      %s105 = ssub.s32 %s29, %s48
      %s106 = ssub.s32 %s31, %s40
      %s107 = sor.u32 %s105, %s106
      %p108 = scmp.eq.s32.totalorder %s107, 0
      %s110 = sadd.s32 %s109, 1
      %s111 = scalar_select %p108, %s109, %s110
      %p114 = pneg %p108
      %p115 = scmp.eq.s32.totalorder %s22, 1
      %p116 = por %p114, %p115
      %p117 = scmp.ne.s32.totalorder %s109, %s112
      %p118 = scmp.eq.s32.totalorder %s22, 0
      %p119 = por %p117, %p118
      %p120 = scmp.ne.s32.totalorder %s109, %s112
      %p121 = scmp.eq.s32.totalorder %s27, 1
      %p122 = por %p120, %p121
      %p123 = scmp.ne.s32.totalorder %s112, %s113
      %p124 = scmp.eq.s32.totalorder %s27, 0
      %p125 = por %p123, %p124
      %p126 = scmp.ne.s32.totalorder %s112, %s113
      %p127 = scmp.eq.s32.totalorder %s28, 1
      %p128 = por %p126, %p127
      %p130 = scmp.ne.s32.totalorder %s113, %s129
      %p131 = scmp.eq.s32.totalorder %s28, 0
      %p132 = por %p130, %p131
      %s133 = ssub.s32 %s29, %s48
      %s134 = ssub.s32 %s30, %s44
      %s135 = sor.u32 %s133, %s134
      %s136 = ssub.s32 %s31, %s40
      %s137 = sor.u32 %s135, %s136
      %p138 = scmp.eq.s32.totalorder %s137, 0
      %s140 = sadd.s32 %s139, 1
      %s141 = scalar_select %p138, %s139, %s140
      %p144 = pneg %p138
      %p145 = scmp.eq.s32.totalorder %s22, 1
      %p146 = por %p144, %p145
      %p147 = scmp.ne.s32.totalorder %s139, %s142
      %p148 = scmp.eq.s32.totalorder %s22, 0
      %p149 = por %p147, %p148
      %p150 = scmp.ne.s32.totalorder %s139, %s142
      %p151 = scmp.eq.s32.totalorder %s27, 1
      %p152 = por %p150, %p151
      %p153 = scmp.ne.s32.totalorder %s142, %s143
      %p154 = scmp.eq.s32.totalorder %s27, 0
      %p155 = por %p153, %p154
      %p156 = scmp.ne.s32.totalorder %s142, %s143
      %p157 = scmp.eq.s32.totalorder %s28, 1
      %p158 = por %p156, %p157
      %p160 = scmp.ne.s32.totalorder %s143, %s159
      %p161 = scmp.eq.s32.totalorder %s28, 0
      %p162 = por %p160, %p161
      %s163 = ssub.s32 %s29, %s48
      %s164 = ssub.s32 %s30, %s44
      %s165 = sor.u32 %s163, %s164
      %p166 = scmp.eq.s32.totalorder %s165, 0
      %s168 = sadd.s32 %s167, 1
      %s169 = scalar_select %p166, %s167, %s168
      %p172 = pneg %p166
      %p173 = scmp.eq.s32.totalorder %s22, 1
      %p174 = por %p172, %p173
      %p175 = scmp.ne.s32.totalorder %s167, %s170
      %p176 = scmp.eq.s32.totalorder %s22, 0
      %p177 = por %p175, %p176
      %p178 = scmp.ne.s32.totalorder %s167, %s170
      %p179 = scmp.eq.s32.totalorder %s27, 1
      %p180 = por %p178, %p179
      %p181 = scmp.ne.s32.totalorder %s170, %s171
      %p182 = scmp.eq.s32.totalorder %s27, 0
      %p183 = por %p181, %p182
      %p184 = scmp.ne.s32.totalorder %s170, %s171
      %p185 = scmp.eq.s32.totalorder %s28, 1
      %p186 = por %p184, %p185
      %p188 = scmp.ne.s32.totalorder %s171, %s187
      %p189 = scmp.eq.s32.totalorder %s28, 0
      %p190 = por %p188, %p189
      %p191 = scmp.le.s32.totalorder 1, %s22
      %p192 = scmp.lt.s32.totalorder %s22, 3
      %p193 = pnand %p191, %p192
      %p194 = pneg %p193
      // Predicated region
      $region9: #{tpu_custom_call.1} parent=5 // pred_check
        _
      $region10: #{tpu_custom_call.1} parent=5 // pred_check_branch
        %196 = sbr.rel (%p193) target = $region12
      $region11: #{tpu_custom_call.1} parent=5 // pred_region
        %s197 = ssub.s32 %s22, 1
      $region12: #{tpu_custom_call.1} parent=5 // pred_fallthru
        _
      %p198 = scmp.lt.s32.totalorder %s22, 2
      // Predicated region
      $region13: #{tpu_custom_call.1} parent=5 // pred_check
        %p199 = pneg %p198
      $region14: #{tpu_custom_call.1} parent=5 // pred_check_branch
        %201 = sbr.rel (%p199) target = $region16
      $region15: #{tpu_custom_call.1} parent=5 // pred_region
        // Predicated region
        $region17: #{tpu_custom_call.1} parent=15 // pred_check
          %p202 = pneg %p63
        $region18: #{tpu_custom_call.1} parent=15 // pred_check_branch
          %204 = sbr.rel (%p202) target = $region20
        $region19: #{tpu_custom_call.1} parent=15 // pred_region
          %s205 = sand.u32 %s53, 1
          %s206 = scalar_lea.sflag [#allocation7], %s205
          %s207 = sand.u32 %s53, 1
          %s208 = smul.addr %s207, 8
          %s209 = scalar_lea.vmem [#allocation6], %s208
          %211 = vsyncadd %s206, 0
          %s212 = smul.addr %s30, 3
          %s213 = smul.addr %s29, 3
          %s214 = sadd.s32 %s212, %s213
          %s215 = smul.addr %s214, 8
          %s216 = scalar_lea.hbm %s0, %s215
          %s218 = sshll.u32 %s216, 4
          %s219 = int_to_ptr.hbm [resolvable:$true] %s218
          %s220 = sshll.u32 %s209, 4
          %s221 = int_to_ptr.vmem [resolvable:$true] %s220
          %223 = dma.hbm_to_vmem [thread:$0]  %s219, 128, %s221, %s206
        $region20: #{tpu_custom_call.1} parent=15 // pred_fallthru
          _
        // Predicated region
        $region21: #{tpu_custom_call.1} parent=15 // pred_check
          %p224 = pneg %p91
        $region22: #{tpu_custom_call.1} parent=15 // pred_check_branch
          %226 = sbr.rel (%p224) target = $region24
        $region23: #{tpu_custom_call.1} parent=15 // pred_region
          %s227 = sand.u32 %s22, 1
          %s228 = scalar_lea.sflag [#allocation10], %s227
          %s229 = sand.u32 %s81, 1
          %s230 = smul.addr %s229, 8
          %s231 = scalar_lea.vmem [#allocation9], %s230
          %233 = vsyncadd %s228, 0
          %s234 = smul.addr %s31, 3
          %s235 = sadd.s32 1, %s234
          %s236 = smul.addr %s29, 3
          %s237 = sadd.s32 %s235, %s236
          %s238 = smul.addr %s237, 8
          %s239 = scalar_lea.hbm %s1, %s238
          %s241 = sshll.u32 %s239, 4
          %s242 = int_to_ptr.hbm [resolvable:$true] %s241
          %s243 = sshll.u32 %s231, 4
          %s244 = int_to_ptr.vmem [resolvable:$true] %s243
          %246 = dma.hbm_to_vmem [thread:$0]  %s242, 128, %s244, %s228
        $region24: #{tpu_custom_call.1} parent=15 // pred_fallthru
          _
        // Predicated region
        $region25: #{tpu_custom_call.1} parent=15 // pred_check
          %p247 = pneg %p119
        $region26: #{tpu_custom_call.1} parent=15 // pred_check_branch
          %249 = sbr.rel (%p247) target = $region28
        $region27: #{tpu_custom_call.1} parent=15 // pred_region
          %s250 = sand.u32 %s22, 1
          %s251 = scalar_lea.sflag [#allocation10], %s250
          %s252 = sand.u32 %s109, 1
          %s253 = smul.addr %s252, 8
          %s254 = scalar_lea.vmem [#allocation11], %s253
          %256 = vsyncadd %s251, 0
          %s257 = smul.addr %s31, 3
          %s258 = sadd.s32 2, %s257
          %s259 = smul.addr %s29, 3
          %s260 = sadd.s32 %s258, %s259
          %s261 = smul.addr %s260, 8
          %s262 = scalar_lea.hbm %s2, %s261
          %s264 = sshll.u32 %s262, 4
          %s265 = int_to_ptr.hbm [resolvable:$true] %s264
          %s266 = sshll.u32 %s254, 4
          %s267 = int_to_ptr.vmem [resolvable:$true] %s266
          %269 = dma.hbm_to_vmem [thread:$0]  %s265, 128, %s267, %s251
        $region28: #{tpu_custom_call.1} parent=15 // pred_fallthru
          _
        // Predicated region
        $region29: #{tpu_custom_call.1} parent=15 // pred_check
          %p270 = pneg %p149
        $region30: #{tpu_custom_call.1} parent=15 // pred_check_branch
          %272 = sbr.rel (%p270) target = $region32
        $region31: #{tpu_custom_call.1} parent=15 // pred_region
          %s273 = sand.u32 %s139, 1
          %s274 = scalar_lea.sflag [#allocation13], %s273
          %s275 = sand.u32 %s139, 1
          %s276 = smul.addr %s275, 8
          %s277 = scalar_lea.vmem [#allocation12], %s276
          %279 = vsyncadd %s274, 0
          %s280 = sadd.s32 %s31, %s30
          %s281 = sadd.s32 %s280, %s29
          %s282 = smul.addr %s281, 8
          %s283 = scalar_lea.hbm %s3, %s282
          %s285 = sshll.u32 %s283, 4
          %s286 = int_to_ptr.hbm [resolvable:$true] %s285
          %s287 = sshll.u32 %s277, 4
          %s288 = int_to_ptr.vmem [resolvable:$true] %s287
          %290 = dma.hbm_to_vmem [thread:$0]  %s286, 128, %s288, %s274
        $region32: #{tpu_custom_call.1} parent=15 // pred_fallthru
          _
      $region16: #{tpu_custom_call.1} parent=5 // pred_fallthru
        _
      %p291 = scmp.le.s32.totalorder 1, %s22
      %p292 = scmp.lt.s32.totalorder %s22, 3
      %p293 = pnand %p291, %p292
      %p294 = pneg %p293
      // Predicated region
      $region33: #{tpu_custom_call.1} parent=5 // pred_check
        _
      $region34: #{tpu_custom_call.1} parent=5 // pred_check_branch
        %296 = sbr.rel (%p293) target = $region36
      $region35: #{tpu_custom_call.1} parent=5 // pred_region
        %s297 = ssub.s32 %s22, 1
        %s298 = sand.u32 %s56, 1
        %s299 = scalar_lea.sflag [#allocation7], %s298
        %s300 = sand.u32 %s56, 1
        %s301 = smul.addr %s300, 8
        %s302 = scalar_lea.vmem [#allocation6], %s301
        // Predicated region
        $region37: #{tpu_custom_call.1} parent=35 // pred_check
          %p303 = pneg %p69
        $region38: #{tpu_custom_call.1} parent=35 // pred_check_branch
          %305 = sbr.rel (%p303) target = $region40
        $region39: #{tpu_custom_call.1} parent=35 // pred_region
          %307 = dma.done %s299, 128
        $region40: #{tpu_custom_call.1} parent=35 // pred_fallthru
          _
        %s308 = sand.u32 %s27, 1
        %s309 = scalar_lea.sflag [#allocation10], %s308
        %s310 = sand.u32 %s84, 1
        %s311 = smul.addr %s310, 8
        %s312 = scalar_lea.vmem [#allocation9], %s311
        // Predicated region
        $region41: #{tpu_custom_call.1} parent=35 // pred_check
          %p313 = pneg %p97
        $region42: #{tpu_custom_call.1} parent=35 // pred_check_branch
          %315 = sbr.rel (%p313) target = $region44
        $region43: #{tpu_custom_call.1} parent=35 // pred_region
          %317 = dma.done %s309, 128
        $region44: #{tpu_custom_call.1} parent=35 // pred_fallthru
          _
        %s318 = sand.u32 %s27, 1
        %s319 = scalar_lea.sflag [#allocation10], %s318
        %s320 = sand.u32 %s112, 1
        %s321 = smul.addr %s320, 8
        %s322 = scalar_lea.vmem [#allocation11], %s321
        // Predicated region
        $region45: #{tpu_custom_call.1} parent=35 // pred_check
          %p323 = pneg %p125
        $region46: #{tpu_custom_call.1} parent=35 // pred_check_branch
          %325 = sbr.rel (%p323) target = $region48
        $region47: #{tpu_custom_call.1} parent=35 // pred_region
          %327 = dma.done %s319, 128
        $region48: #{tpu_custom_call.1} parent=35 // pred_fallthru
          _
        %s328 = sand.u32 %s142, 1
        %s329 = scalar_lea.sflag [#allocation13], %s328
        %s330 = sand.u32 %s142, 1
        %s331 = smul.addr %s330, 8
        %s332 = scalar_lea.vmem [#allocation12], %s331
        // Predicated region
        $region49: #{tpu_custom_call.1} parent=35 // pred_check
          %p333 = pneg %p155
        $region50: #{tpu_custom_call.1} parent=35 // pred_check_branch
          %335 = sbr.rel (%p333) target = $region52
        $region51: #{tpu_custom_call.1} parent=35 // pred_region
          %337 = dma.done %s329, 128
        $region52: #{tpu_custom_call.1} parent=35 // pred_fallthru
          _
        %s338 = sand.u32 %s56, 1
        %s339 = scalar_lea.sflag [#allocation7], %s338
        %s340 = sand.u32 %s56, 1
        %s341 = smul.addr %s340, 8
        %s342 = scalar_lea.vmem [#allocation6], %s341
        %p343 = pneg %p69
        %p344 = pneg %p66
        %s345 = sand.u32 %s27, 1
        %s346 = scalar_lea.sflag [#allocation10], %s345
        %s347 = sand.u32 %s84, 1
        %s348 = smul.addr %s347, 8
        %s349 = scalar_lea.vmem [#allocation9], %s348
        %p350 = pneg %p97
        %p351 = pneg %p94
        %s352 = sand.u32 %s27, 1
        %s353 = scalar_lea.sflag [#allocation10], %s352
        %s354 = sand.u32 %s112, 1
        %s355 = smul.addr %s354, 8
        %s356 = scalar_lea.vmem [#allocation11], %s355
        %p357 = pneg %p125
        %p358 = pneg %p122
        %s359 = sand.u32 %s142, 1
        %s360 = scalar_lea.sflag [#allocation13], %s359
        %s361 = sand.u32 %s142, 1
        %s362 = smul.addr %s361, 8
        %s363 = scalar_lea.vmem [#allocation12], %s362
        %p364 = pneg %p155
        %p365 = pneg %p152
        %p366 = pneg %p183
        %p367 = pneg %p180
        %s368 = sand.u32 %s170, 1
        %s369 = scalar_lea.sflag [#allocation8], %s368
        %s370 = sand.u32 %s170, 1
        %s371 = smul.addr %s370, 8
        %s372 = scalar_lea.vmem [#allocation14], %s371
        %p373 = scmp.eq.s32.totalorder %s34, 0
        // Predicated region
        $region53: #{tpu_custom_call.1} parent=35 // pred_check
          %p374 = pneg %p373
        $region54: #{tpu_custom_call.1} parent=35 // pred_check_branch
          %376 = sbr.rel (%p374) target = $region56
        $region55: #{tpu_custom_call.1} parent=35 // pred_region
          %v377 = vld [vmem:[%s302] sm:$0xff]
          %v378 = vmul.f32 %v377, 0.088388346
          %379 = vst [vmem:[#allocation2] sm:$0xff] %v378
          %vm380 = vcmask 7168
          %381 = vst.msk [vmem:[#allocation3] sm:$0xff] %vm380, -inf
          %382 = vst.msk [vmem:[#allocation4] sm:$0xff] %vm380, 0.0
          %383 = vst [vmem:[#allocation5] sm:$0xff] 0.0
        $region56: #{tpu_custom_call.1} parent=35 // pred_fallthru
          _
        %v384 = vld [vmem:[#allocation2] sm:$0xff]
        %v385 = vld [vmem:[%s312] sm:$0xff]
        %v386 = vld [vmem:[%s332] sm:$0xff]
        %387 = vmatpush.xpose.msra.mxu0 0.0
        %388 = vmatpush.xpose.msra.mxu0 0.0
        %389 = vmatpush.xpose.msra.mxu0 0.0
        %390 = vmatpush.xpose.msra.mxu0 0.0
        %391 = vmatpush.xpose.msra.mxu0 0.0
        %392 = vmatpush.xpose.msra.mxu0 0.0
        %393 = vmatpush.xpose.msra.mxu0 0.0
        %394 = vmatpush.xpose.msra.mxu0 0.0
        %395 = vmatpush.xpose.msra.mxu0 0.0
        %396 = vmatpush.xpose.msra.mxu0 0.0
        %397 = vmatpush.xpose.msra.mxu0 0.0
        %398 = vmatpush.xpose.msra.mxu0 0.0
        %399 = vmatpush.xpose.msra.mxu0 0.0
        %400 = vmatpush.xpose.msra.mxu0 0.0
        %401 = vmatpush.xpose.msra.mxu0 0.0
        %402 = vmatpush.xpose.msra.mxu0 %v385
        %403 = vmatmul.f32.gmra.mxu0 %v384
        %v404 = vpop.f32.mrf.mxu0
        %v405 = vadd.f32 %v386, %v404
        %406 = vdwg.mxu0
        %v407 = vld [vmem:[#allocation3] sm:$0xff]
        %vm408 = vcmask 64512
        %v409 = vsel %vm408, %v405, -inf
        %410 = vmax.xlane.f32.xlu0 %v409
        %v411 = vpop.xlane.xlu0 %410
        %v412 = vmax.f32 %v407, %v411
        %v413 = vsub.f32 %v407, %v412
        %v414 = vmul.f32 %v413, 1.442695
        %v415 = vpow.pop %v414
        %417 = vset.pattern.permute.xlu0 0
        %418 = vperm.xlu0 %417, %v412
        %v419 = vpop.permute.xlu0 %418
        %v421 = vsub.f32 %v405, %v419
        %v422 = vmul.f32 %v421, 1.442695
        %v423 = vpow.pop %v422
        %v424 = vld [vmem:[#allocation4] sm:$0xff]
        %v425 = vmul.f32 %v415, %v424
        %v426 = vsel %vm408, %v423, 0.0
        %427 = vadd.xlane.f32.xlu0 %v426
        %v428 = vpop.xlane.xlu0 %427
        %v429 = vadd.f32 %v425, %v428
        %vm430 = vcmask 7168
        %431 = vst.msk [vmem:[#allocation4] sm:$0xff] %vm430, %v429
        %v432 = vld [vmem:[#allocation5] sm:$0xff]
        %434 = vset.pattern.permute.xlu0 0
        %435 = vperm.xlu0 %434, %v415
        %v436 = vpop.permute.xlu0 %435
        %v438 = vmul.f32 %v436, %v432
        %v439 = vld [vmem:[%s322] sm:$0xff]
        %v441 = vsel %vm408, %v423, 0
        %443 = vmatpush.msra.mxu0 0.0
        %444 = vmatpush.msra.mxu0 0.0
        %445 = vmatpush.msra.mxu0 0.0
        %446 = vmatpush.msra.mxu0 0.0
        %447 = vmatpush.msra.mxu0 0.0
        %448 = vmatpush.msra.mxu0 0.0
        %449 = vmatpush.msra.mxu0 0.0
        %450 = vmatpush.msra.mxu0 0.0
        %451 = vmatpush.msra.mxu0 0.0
        %452 = vmatpush.msra.mxu0 0.0
        %453 = vmatpush.msra.mxu0 0.0
        %454 = vmatpush.msra.mxu0 0.0
        %455 = vmatpush.msra.mxu0 0.0
        %456 = vmatpush.msra.mxu0 0.0
        %457 = vmatpush.msra.mxu0 0.0
        %458 = vmatpush.msra.mxu0 %v439
        %459 = vmatmul.f32.gmra.mxu0 %v441
        %v460 = vpop.f32.mrf.mxu0
        %v461 = vadd.f32 0.0, %v460
        %462 = vdwg.mxu0
        %v463 = vadd.f32 %v438, %v461
        %464 = vst [vmem:[#allocation5] sm:$0xff] %v463
        %465 = vst.msk [vmem:[#allocation3] sm:$0xff] %vm430, %v412
        // Predicated region
        $region57: #{tpu_custom_call.1} parent=35 // pred_check
          %p466 = pneg %p373
        $region58: #{tpu_custom_call.1} parent=35 // pred_check_branch
          %468 = sbr.rel (%p466) target = $region60
        $region59: #{tpu_custom_call.1} parent=35 // pred_region
          %v469 = vld [vmem:[#allocation4] sm:$0xff]
          %v470 = vrcp.pop %v469
          %v471 = vmul.f32 %v469, %v470
          %v472 = vsub.f32 1.0, %v471
          %v473 = vmul.f32 %v470, %v472
          %v474 = vadd.f32 %v470, %v473
          %vm475 = vweird.f32 %v469
          %vm476 = vweird.f32 %v470
          %vm477 = vmor %vm475, %vm476
          %v478 = vsel %vm477, %v470, %v474
          %v479 = vand.u32 2147483647, %v469
          %vm480 = vcmp.eq.f32.partialorder %v479, 8.507059e+37
          %v481 = vand.u32 %v469, 2147483648
          %v482 = vor.u32 1.1754944e-38, %v481
          %v483 = vsel %vm480, %v482, %v478
          %v484 = vmul.f32 1.0, %v483
          %v485 = vld [vmem:[#allocation5] sm:$0xff]
          %487 = vset.pattern.permute.xlu0 0
          %488 = vperm.xlu0 %487, %v484
          %v489 = vpop.permute.xlu0 %488
          %v491 = vmul.f32 %v485, %v489
          %492 = vst [vmem:[%s372] sm:$0xff] %v491
        $region60: #{tpu_custom_call.1} parent=35 // pred_fallthru
          _
        %s493 = sand.u32 %s170, 1
        %s494 = scalar_lea.sflag [#allocation8], %s493
        %s495 = sand.u32 %s170, 1
        %s496 = smul.addr %s495, 8
        %s497 = scalar_lea.vmem [#allocation14], %s496
        // Predicated region
        $region61: #{tpu_custom_call.1} parent=35 // pred_check
          %p498 = pneg %p180
        $region62: #{tpu_custom_call.1} parent=35 // pred_check_branch
          %500 = sbr.rel (%p498) target = $region64
        $region63: #{tpu_custom_call.1} parent=35 // pred_region
          %502 = vsyncadd %s494, 0
          %s503 = sadd.s32 %s33, %s32
          %s504 = smul.addr %s503, 8
          %s505 = scalar_lea.hbm %s4, %s504
          %s507 = sshll.u32 %s497, 4
          %s508 = int_to_ptr.vmem [resolvable:$true] %s507
          %s509 = sshll.u32 %s505, 4
          %s510 = int_to_ptr.hbm [resolvable:$true] %s509
          %512 = dma.vmem_to_hbm [thread:$0]  %s508, 128, %s510, %s494
        $region64: #{tpu_custom_call.1} parent=35 // pred_fallthru
          _
      $region36: #{tpu_custom_call.1} parent=5 // pred_fallthru
        _
      %p513 = scmp.le.s32.totalorder 2, %s22
      // Predicated region
      $region65: #{tpu_custom_call.1} parent=5 // pred_check
        %p514 = pneg %p513
      $region66: #{tpu_custom_call.1} parent=5 // pred_check_branch
        %516 = sbr.rel (%p514) target = $region68
      $region67: #{tpu_custom_call.1} parent=5 // pred_region
        %s517 = ssub.s32 %s22, 2
        // Predicated region
        $region69: #{tpu_custom_call.1} parent=67 // pred_check
          %p518 = pneg %p186
        $region70: #{tpu_custom_call.1} parent=67 // pred_check_branch
          %520 = sbr.rel (%p518) target = $region72
        $region71: #{tpu_custom_call.1} parent=67 // pred_region
          %s521 = sand.u32 %s171, 1
          %s522 = scalar_lea.sflag [#allocation8], %s521
          %s523 = sand.u32 %s171, 1
          %s524 = smul.addr %s523, 8
          %s525 = scalar_lea.vmem [#allocation14], %s524
          %527 = dma.done %s522, 128
        $region72: #{tpu_custom_call.1} parent=67 // pred_fallthru
          _
      $region68: #{tpu_custom_call.1} parent=5 // pred_fallthru
        _
    $region6: #{tpu_custom_call.1} parent=1 // loop_footer
      %s26 = sadd.s32 1, %s22
    $region7: #{tpu_custom_call.1} parent=1 // loop_footer_branch
      %21 = sbr.rel target = $region3
    $region8: #{tpu_custom_call.1} parent=1 // loop_exit
      _
    %528 = vsyncpa [#allocation7], 1
    %s529 = scalar_lea.sflag [#allocation7], 1
    %530 = vsyncpa %s529, 1
    %531 = vsyncpa [#allocation10], 1
    %s532 = scalar_lea.sflag [#allocation10], 1
    %533 = vsyncpa %s532, 1
    %534 = vsyncpa [#allocation13], 1
    %s535 = scalar_lea.sflag [#allocation13], 1
    %536 = vsyncpa %s535, 1
    %537 = vsyncpa [#allocation8], 1
    %s538 = scalar_lea.sflag [#allocation8], 1
    %539 = vsyncpa %s538, 1

</llo_original>
